<compile_context>
chip_gen: v5e
topology: v5e:2x2
jax: 0.10.0
libtpu: 0.0.40
codegen_flags: <defaults>
</compile_context>

<pallas_src>
import functools
import math

import jax
import jax.numpy as jnp
from jax.experimental import pallas as pl
from jax.experimental.pallas import tpu as pltpu

LANES = 128
ACC_ROWS = 64                       # (64, 128) f32 accumulator = 8 vregs, 32 KiB


def _block_budget_bytes():
    """Per-input, per-pipeline-buffer VMEM budget (bytes) for one block."""
    kind = ""
    try:
        kind = jax.devices()[0].device_kind.lower()
    except Exception:
        pass
    # v6e / v7x: 32 MiB default scoped VMEM -> 3 inputs x 2 buffers x 4 MiB = 24 MiB.
    if "v6" in kind or "v7" in kind:
        return 4 << 20
    # v5e (16 MiB default scoped VMEM), older generations, unknown backends:
    # 2 MiB/input/buffer -> 12 MiB total, safely inside every default limit.
    return 2 << 20


def _var_atten_kernel(o_ref, t_ref, lv_ref, acc_ref, *,
                      tile_rows, acc_rows, num_steps, rows_rem):
    s = pl.program_id(0)

    @pl.when(s == 0)
    def _init():
        acc_ref[...] = jnp.zeros_like(acc_ref)

    def accumulate(masked):
        o = o_ref[...].astype(jnp.float32)
        t = t_ref[...].astype(jnp.float32)
        lv = lv_ref[...].astype(jnp.float32)
        diff = o - t
        if masked:
            # Only the ragged last block reaches here (gated by pl.when below).
            # Zero lv and diff for invalid rows BEFORE the exp: contribution becomes
            # exp(0) * 0 + 0 = 0 and no garbage ever feeds the EUP.
            row = jax.lax.broadcasted_iota(jnp.int32, (tile_rows, 1), 0)
            valid = row < rows_rem
            lv = jnp.where(valid, lv, 0.0)
            diff = jnp.where(valid, diff, 0.0)
        # 0.5 * coef * res + 0.5 * lv == 0.5 * (coef*res + lv); the 0.5 and the 1/n of
        # the mean are applied once in the wrapper.
        loss = jnp.exp(-lv) * (diff * diff) + lv
        if tile_rows == acc_rows:
            acc_ref[...] += loss
        else:
            # Fold (tile_rows, 128) into (acc_rows, 128): independent VPU add chains.
            acc_ref[...] += jnp.sum(
                loss.reshape(tile_rows // acc_rows, acc_rows, LANES), axis=0)

    ragged = rows_rem != tile_rows
    if not ragged:
        accumulate(False)                    # aligned case: zero masking overhead
    elif num_steps == 1:
        accumulate(True)                     # single (possibly short) block
    else:
        last = num_steps - 1
        @pl.when(s < last)
        def _full_blocks():
            accumulate(False)
        @pl.when(s == last)
        def _ragged_block():
            accumulate(True)


def variance_attenuation_loss(output, target, log_variance, *, block_budget_bytes=None):
    assert output.shape == target.shape == log_variance.shape
    n = math.prod(output.shape)
    if n == 0:
        return jnp.float32(jnp.nan)          # torch mean of empty tensor is nan

    o_flat = output.reshape(-1)
    t_flat = target.reshape(-1)
    lv_flat = log_variance.reshape(-1)

    rows = n // LANES
    n_bulk = rows * LANES

    # <128-element tail (n % 128 != 0): summed directly in the wrapper instead of
    # padding all three inputs with a full HBM copy each.
    tail_sum = jnp.float32(0.0)
    if n_bulk < n:
        to = o_flat[n_bulk:].astype(jnp.float32)
        tt = t_flat[n_bulk:].astype(jnp.float32)
        tlv = lv_flat[n_bulk:].astype(jnp.float32)
        d = to - tt
        tail_sum = jnp.sum(jnp.exp(-tlv) * (d * d) + tlv)

    if rows == 0:
        return (tail_sum * (0.5 / n)).astype(jnp.float32)

    def as2d(x):
        if n_bulk < x.shape[0]:
            x = x[:n_bulk]
        return x.reshape(rows, LANES)        # zero-copy view in the aligned case

    o2, t2, lv2 = as2d(o_flat), as2d(t_flat), as2d(lv_flat)

    itemsize = max(a.dtype.itemsize for a in (o2, t2, lv2))
    budget = _block_budget_bytes() if block_budget_bytes is None else block_budget_bytes
    max_tile_rows = max(ACC_ROWS, (budget // (LANES * itemsize)) // ACC_ROWS * ACC_ROWS)

    if rows <= max_tile_rows:
        tile_rows = rows                     # single block == full array dims (legal)
    else:
        tile_rows = max_tile_rows            # multiple of ACC_ROWS (hence of 8)
    acc_rows = next((c for c in (ACC_ROWS, 32, 16, 8) if tile_rows % c == 0), tile_rows)
    num_steps = -(-rows // tile_rows)
    rows_rem = rows - (num_steps - 1) * tile_rows

    kernel = functools.partial(
        _var_atten_kernel, tile_rows=tile_rows, acc_rows=acc_rows,
        num_steps=num_steps, rows_rem=rows_rem)

    tile_spec = pl.BlockSpec((tile_rows, LANES), lambda s: (s, 0))
    out_spec = pl.BlockSpec((acc_rows, LANES), lambda s: (0, 0))

    cost = pl.CostEstimate(
        flops=6 * n_bulk,
        transcendentals=n_bulk,
        bytes_accessed=int(o2.nbytes + t2.nbytes + lv2.nbytes + acc_rows * LANES * 4))

    partial = pl.pallas_call(
        kernel,
        out_shape=jax.ShapeDtypeStruct((acc_rows, LANES), jnp.float32),
        grid_spec=pltpu.PrefetchScalarGridSpec(
            num_scalar_prefetch=0,
            grid=(num_steps,),
            in_specs=[tile_spec, tile_spec, tile_spec],
            out_specs=out_spec,
        ),
        compiler_params=pltpu.CompilerParams(dimension_semantics=("arbitrary",)),
        cost_estimate=cost,
    )(o2, t2, lv2)

    return ((jnp.sum(partial) + tail_sum) * (0.5 / n)).astype(jnp.float32)


def _reference(output, target, log_variance):
    res = (output - target) ** 2
    coef = jnp.exp(-log_variance)
    loss = 0.5 * coef * res + 0.5 * log_variance
    return jnp.mean(loss)


if __name__ == "__main__":
    key = jax.random.PRNGKey(0)

    def run_case(case_key, shape, dtype, **kw):
        k1, k2, k3 = jax.random.split(case_key, 3)
        output = jax.random.normal(k1, shape, dtype=jnp.float32).astype(dtype)
        target = jax.random.normal(k2, shape, dtype=jnp.float32).astype(dtype)
        log_variance = (0.5 * jax.random.normal(k3, shape, dtype=jnp.float32)).astype(dtype)
        loss = jax.block_until_ready(
            variance_attenuation_loss(output, target, log_variance, **kw))
        ref = _reference(output.astype(jnp.float32), target.astype(jnp.float32),
                         log_variance.astype(jnp.float32))
        assert jnp.allclose(loss, ref, rtol=1e-4, atol=1e-5), (shape, dtype, loss, ref)

    k1, k2, k3, k4 = jax.random.split(key, 4)
    # Primary small NCHW case: single aligned block, mask-free fast path.
    run_case(k1, (2, 4, 16, 16), jnp.float32)
    # bf16 inputs stay bf16 in HBM; the f32 cast happens inside the kernel.
    run_case(k2, (4, 4, 64, 64), jnp.bfloat16)
    # Tiny forced block budget -> multi-step accumulation + pl.when-gated ragged last
    # block (150 rows -> blocks of 128, remainder 22).
    run_case(k3, (2, 3, 50, 64), jnp.float32, block_budget_bytes=64 << 10)
    # Element count not a multiple of 128: kernel sums the aligned bulk, the wrapper
    # adds the 3-element tail (no jnp.pad copy of the inputs).
    run_case(k4, (3, 5, 7, 11), jnp.float32)

    print("KERNEL_OK")
</pallas_src>

<mosaic_0001>
module attributes {stable_mosaic.version = 11 : i64} {
  func.func @_var_atten_kernel(%arg0: i32, %arg1: memref<16x128xf32, #tpu.memory_space<vmem>>, %arg2: memref<16x128xf32, #tpu.memory_space<vmem>>, %arg3: memref<16x128xf32, #tpu.memory_space<vmem>>, %arg4: memref<16x128xf32, #tpu.memory_space<vmem>>) attributes {dimension_semantics = [#tpu.dimension_semantics<arbitrary>], iteration_bounds = array<i64: 1>, scalar_prefetch = 0 : i64, scratch_operands = 0 : i64, tpu.core_type = #tpu.core_type<tc>, window_params = [{transform_indices = @transform_0, window_bounds = array<i64: 16, 128>}, {transform_indices = @transform_1, window_bounds = array<i64: 16, 128>}, {transform_indices = @transform_2, window_bounds = array<i64: 16, 128>}, {pipeline_mode = #tpu.pipeline_mode<synchronous>, transform_indices = @transform_3, window_bounds = array<i64: 16, 128>}]} {
    %c0_i32 = arith.constant 0 : i32
    %0 = arith.cmpi eq, %arg0, %c0_i32 : i32
    %1 = arith.extui %0 : i1 to i32
    %c0_i32_0 = arith.constant 0 : i32
    %2 = arith.cmpi ne, %1, %c0_i32_0 : i32
    scf.if %2 {
      %cst_10 = arith.constant 0.000000e+00 : f32
      %16 = vector.broadcast %cst_10 : f32 to vector<16x128xf32>
      %c0_11 = arith.constant 0 : index
      %c0_12 = arith.constant 0 : index
      %17 = vector.load %arg4[%c0_11, %c0_12] : memref<16x128xf32, #tpu.memory_space<vmem>>, vector<16x128xf32>
      tpu.vector_store %arg4[%c0_11, %c0_12], %16 {strides = array<i32>} : memref<16x128xf32, #tpu.memory_space<vmem>>, vector<16x128xf32>,
    } else {
    }
    %c0 = arith.constant 0 : index
    %c0_1 = arith.constant 0 : index
    %3 = vector.load %arg1[%c0, %c0_1] : memref<16x128xf32, #tpu.memory_space<vmem>>, vector<16x128xf32>
    %c0_2 = arith.constant 0 : index
    %c0_3 = arith.constant 0 : index
    %4 = vector.load %arg2[%c0_2, %c0_3] : memref<16x128xf32, #tpu.memory_space<vmem>>, vector<16x128xf32>
    %c0_4 = arith.constant 0 : index
    %c0_5 = arith.constant 0 : index
    %5 = vector.load %arg3[%c0_4, %c0_5] : memref<16x128xf32, #tpu.memory_space<vmem>>, vector<16x128xf32>
    %6 = arith.subf %3, %4 : vector<16x128xf32>
    %cst = arith.constant 0.000000e+00 : f32
    %7 = vector.broadcast %cst : f32 to vector<16x128xf32>
    %8 = arith.subf %7, %5 : vector<16x128xf32>
    %9 = math.exp %8 : vector<16x128xf32>
    %10 = arith.mulf %6, %6 : vector<16x128xf32>
    %11 = arith.mulf %9, %10 : vector<16x128xf32>
    %12 = arith.addf %11, %5 : vector<16x128xf32>
    %c0_6 = arith.constant 0 : index
    %c0_7 = arith.constant 0 : index
    %13 = vector.load %arg4[%c0_6, %c0_7] : memref<16x128xf32, #tpu.memory_space<vmem>>, vector<16x128xf32>
    %14 = arith.addf %13, %12 : vector<16x128xf32>
    %c0_8 = arith.constant 0 : index
    %c0_9 = arith.constant 0 : index
    %15 = vector.load %arg4[%c0_8, %c0_9] : memref<16x128xf32, #tpu.memory_space<vmem>>, vector<16x128xf32>
    tpu.vector_store %arg4[%c0_8, %c0_9], %14 {strides = array<i32>} : memref<16x128xf32, #tpu.memory_space<vmem>>, vector<16x128xf32>,
    return
  }
  func.func @transform_0(%arg0: i32) -> (i32, i32) {
    %c0_i32 = arith.constant 0 : i32
    %c0_i32_0 = arith.constant 0 : i32
    return %arg0, %c0_i32 : i32, i32
  }
  func.func @transform_1(%arg0: i32) -> (i32, i32) {
    %c0_i32 = arith.constant 0 : i32
    %c0_i32_0 = arith.constant 0 : i32
    return %arg0, %c0_i32 : i32, i32
  }
  func.func @transform_2(%arg0: i32) -> (i32, i32) {
    %c0_i32 = arith.constant 0 : i32
    %c0_i32_0 = arith.constant 0 : i32
    return %arg0, %c0_i32 : i32, i32
  }
  func.func @transform_3(%arg0: i32) -> (i32, i32) {
    %c0_i32 = arith.constant 0 : i32
    %c0_i32_0 = arith.constant 0 : i32
    %c0_i32_1 = arith.constant 0 : i32
    return %c0_i32, %c0_i32_0 : i32, i32
  }
}

</mosaic_0001>

<llo_original>
// kernel: tpu_custom_call.1
$region0: #{tpu_custom_call.1}
  #allocation0 [shape = 'u32[]', space=smem, size = 0x4, offset = 0x4, fixed_abs, tag = 'smem constant byte address 0x4 - core index']
  #allocation1 [shape = 'u32[72,128]{1,0:T(1,128)}', space=vmem, size = 0x9000, scoped, tag = 'internal scratch']
  %s0 = inlined_call_operand.hbm [shape: f32[16,128], index: 0, kind: input, shape index: {}]
  %s1 = inlined_call_operand.hbm [shape: f32[16,128], index: 1, kind: input, shape index: {}]
  %s2 = inlined_call_operand.hbm [shape: f32[16,128], index: 2, kind: input, shape index: {}]
  %s3 = inlined_call_operand.hbm [shape: f32[16,128], index: 3, kind: output, shape index: {}]
  %s4 = sld [smem:[#allocation0]]
  $region38: #{tpu_custom_call.1} parent=0
    _
  %s6 = ssub.s32 1, %s4
  %s7 = scalar_select 0, %s6, %s4
  $region1: #{tpu_custom_call.1} parent=0
    #allocation2 [shape = 'u8[8192]{0}', space=vmem, size = 0x2000, scoped, tag = 'input window, operand 0, single buffered']
    #allocation3 [shape = 's32[1]{0}', space=sflag, size = 0x4, scoped, tag = 'scoped memory for tpu_custom_call.1']
    #allocation4 [shape = 's32[1]{0}', space=sflag, size = 0x4, scoped, tag = 'scoped memory for tpu_custom_call.1']
    #allocation5 [shape = 'u8[8192]{0}', space=vmem, size = 0x2000, scoped, tag = 'input window, operand 1, single buffered']
    #allocation6 [shape = 's32[1]{0}', space=sflag, size = 0x4, scoped, tag = 'scoped memory for tpu_custom_call.1']
    #allocation7 [shape = 'u8[8192]{0}', space=vmem, size = 0x2000, scoped, tag = 'input window, operand 2, single buffered']
    #allocation8 [shape = 'u8[8192]{0}', space=vmem, size = 0x2000, scoped, tag = 'output window, operand 0, single buffered']
    %8 = vsyncpa [#allocation3], 0
    %9 = vsyncpa [#allocation6], 0
    %10 = vsyncpa [#allocation4], 0
    // Predicated region
    $region2: #{tpu_custom_call.1} parent=1 // pred_check
      _
    $region3: #{tpu_custom_call.1} parent=1 // pred_check_branch
      %12 = sbr.rel (0) target = $region5
    $region4: #{tpu_custom_call.1} parent=1 // pred_region
      %14 = vsyncadd [#allocation3], 0
      %s15 = sshll.u32 %s0, 4
      %s16 = int_to_ptr.hbm [resolvable:$true] %s15
      %s17 = sshll.u32 [#allocation2], 4
      %s18 = int_to_ptr.vmem [resolvable:$true] %s17
      %23 = dma.hbm_to_vmem [thread:$0]  %s16, 256, %s18, [#allocation3], 128, 128, 8
    $region5: #{tpu_custom_call.1} parent=1 // pred_fallthru
      _
    // Predicated region
    $region6: #{tpu_custom_call.1} parent=1 // pred_check
      _
    $region7: #{tpu_custom_call.1} parent=1 // pred_check_branch
      %25 = sbr.rel (0) target = $region9
    $region8: #{tpu_custom_call.1} parent=1 // pred_region
      %27 = vsyncadd [#allocation6], 0
      %s28 = sshll.u32 %s1, 4
      %s29 = int_to_ptr.hbm [resolvable:$true] %s28
      %s30 = sshll.u32 [#allocation5], 4
      %s31 = int_to_ptr.vmem [resolvable:$true] %s30
      %36 = dma.hbm_to_vmem [thread:$0]  %s29, 256, %s31, [#allocation6], 128, 128, 8
    $region9: #{tpu_custom_call.1} parent=1 // pred_fallthru
      _
    // Predicated region
    $region10: #{tpu_custom_call.1} parent=1 // pred_check
      _
    $region11: #{tpu_custom_call.1} parent=1 // pred_check_branch
      %38 = sbr.rel (0) target = $region13
    $region12: #{tpu_custom_call.1} parent=1 // pred_region
      %40 = vsyncadd [#allocation6], 0
      %s41 = sshll.u32 %s2, 4
      %s42 = int_to_ptr.hbm [resolvable:$true] %s41
      %s43 = sshll.u32 [#allocation7], 4
      %s44 = int_to_ptr.vmem [resolvable:$true] %s43
      %49 = dma.hbm_to_vmem [thread:$0]  %s42, 256, %s44, [#allocation6], 128, 128, 8
    $region13: #{tpu_custom_call.1} parent=1 // pred_fallthru
      _
    // Predicated region
    $region14: #{tpu_custom_call.1} parent=1 // pred_check
      _
    $region15: #{tpu_custom_call.1} parent=1 // pred_check_branch
      %51 = sbr.rel (0) target = $region17
    $region16: #{tpu_custom_call.1} parent=1 // pred_region
      %53 = dma.done [#allocation3], 256
    $region17: #{tpu_custom_call.1} parent=1 // pred_fallthru
      _
    // Predicated region
    $region18: #{tpu_custom_call.1} parent=1 // pred_check
      _
    $region19: #{tpu_custom_call.1} parent=1 // pred_check_branch
      %55 = sbr.rel (0) target = $region21
    $region20: #{tpu_custom_call.1} parent=1 // pred_region
      %57 = dma.done [#allocation6], 256
    $region21: #{tpu_custom_call.1} parent=1 // pred_fallthru
      _
    // Predicated region
    $region22: #{tpu_custom_call.1} parent=1 // pred_check
      _
    $region23: #{tpu_custom_call.1} parent=1 // pred_check_branch
      %59 = sbr.rel (0) target = $region25
    $region24: #{tpu_custom_call.1} parent=1 // pred_region
      %61 = dma.done [#allocation6], 256
    $region25: #{tpu_custom_call.1} parent=1 // pred_fallthru
      _
    %p62 = scmp.eq.s32.totalorder 0, 0
    // Predicated region
    $region26: #{tpu_custom_call.1} parent=1 // pred_check
      %p63 = pneg %p62
    $region27: #{tpu_custom_call.1} parent=1 // pred_check_branch
      %65 = sbr.rel (%p63) target = $region29
    $region28: #{tpu_custom_call.1} parent=1 // pred_region
      %66 = vst [vmem:[#allocation8] sm:$0xff] 0.0
      %67 = vst [vmem:[#allocation8 + $0x8] sm:$0xff] 0.0
    $region29: #{tpu_custom_call.1} parent=1 // pred_fallthru
      _
    %v68 = vld [vmem:[#allocation2] sm:$0xff]
    %v69 = vld [vmem:[#allocation2 + $0x8] sm:$0xff]
    %v70 = vld [vmem:[#allocation5] sm:$0xff]
    %v71 = vld [vmem:[#allocation5 + $0x8] sm:$0xff]
    %v72 = vld [vmem:[#allocation7] sm:$0xff]
    %v73 = vld [vmem:[#allocation7 + $0x8] sm:$0xff]
    %v74 = vsub.f32 %v68, %v70
    %v75 = vsub.f32 %v69, %v71
    %v76 = vsub.f32 0.0, %v72
    %v77 = vsub.f32 0.0, %v73
    %v78 = vmul.f32 %v76, 1.442695
    %v79 = vpow.pop %v78
    %v80 = vmul.f32 %v77, 1.442695
    %v81 = vpow.pop %v80
    %v82 = vmul.f32 %v74, %v74
    %v83 = vmul.f32 %v75, %v75
    %v84 = vmul.f32 %v79, %v82
    %v85 = vmul.f32 %v81, %v83
    %v86 = vadd.f32 %v84, %v72
    %v87 = vadd.f32 %v85, %v73
    %v88 = vld [vmem:[#allocation8] sm:$0xff]
    %v89 = vld [vmem:[#allocation8 + $0x8] sm:$0xff]
    %v90 = vadd.f32 %v88, %v86
    %v91 = vadd.f32 %v89, %v87
    %92 = vst [vmem:[#allocation8] sm:$0xff] %v90
    %93 = vst [vmem:[#allocation8 + $0x8] sm:$0xff] %v91
    // Predicated region
    $region30: #{tpu_custom_call.1} parent=1 // pred_check
      _
    $region31: #{tpu_custom_call.1} parent=1 // pred_check_branch
      %95 = sbr.rel (0) target = $region33
    $region32: #{tpu_custom_call.1} parent=1 // pred_region
      %97 = vsyncadd [#allocation4], 0
      %s98 = sshll.u32 [#allocation8], 4
      %s99 = int_to_ptr.vmem [resolvable:$true] %s98
      %s100 = sshll.u32 %s3, 4
      %s101 = int_to_ptr.hbm [resolvable:$true] %s100
      %106 = dma.vmem_to_hbm [thread:$0]  %s99, 256, %s101, [#allocation4], 128, 128, 8
    $region33: #{tpu_custom_call.1} parent=1 // pred_fallthru
      _
    // Predicated region
    $region34: #{tpu_custom_call.1} parent=1 // pred_check
      _
    $region35: #{tpu_custom_call.1} parent=1 // pred_check_branch
      %108 = sbr.rel (0) target = $region37
    $region36: #{tpu_custom_call.1} parent=1 // pred_region
      %110 = dma.done [#allocation4], 256
    $region37: #{tpu_custom_call.1} parent=1 // pred_fallthru
      _
    %111 = vsyncpa [#allocation3], 1
    %112 = vsyncpa [#allocation6], 1
    %113 = vsyncpa [#allocation4], 1

</llo_original>
